<compile_context>
chip_gen: v6e
topology: v6e:2x2x1
jax: 0.10.0
libtpu: 0.0.40
codegen_flags: <defaults>
</compile_context>

<pallas_src>
import jax
import jax.numpy as jnp
from jax.experimental import pallas as pl
from jax.experimental.pallas import tpu as pltpu


def _round_up(x, m):
    return (x + m - 1) // m * m


def _tile_plan(n):
    """Pick (n_pad, tm, tk): destination-row tile tm, source (contraction) tile tk."""
    if n <= 1024:
        n_pad = _round_up(max(n, 1), 128)     # single lane/sublane-aligned tile
        return n_pad, n_pad, n_pad
    tm = 512                                  # v7x-safe; bump to 1024 on v5e/v6e if desired
    n_pad = _round_up(n, tm)                  # pad to tm, NOT to tk (quadratic savings)
    for tk in (4096, 2048, 1024, 512):        # largest contraction tile dividing n_pad
        if n_pad % tk == 0:
            return n_pad, tm, tk
    return n_pad, tm, tm                      # unreachable (512 always divides)


def sage_layer_kernel(adj_ref, xsrc_ref, xdst_ref, invdeg_ref, wl_ref, wr_ref, b_ref,
                      o_ref, acc_ref):
    """One SAGEConv dst-row tile:
         acc  = sum_k adj_counts[i,k] @ x[k]            (f32 accumulation over k)
         out  = relu((acc * 1/deg) @ W_l + x[i] @ W_r + b)
    """
    k = pl.program_id(1)

    @pl.when(k == 0)
    def _init():
        acc_ref[...] = jnp.zeros_like(acc_ref)

    # int8 edge counts -> bf16 (VPU cast, hidden under the adj DMA), MXU matmul, f32 acc.
    acc_ref[...] += jnp.dot(adj_ref[...].astype(jnp.bfloat16), xsrc_ref[...],
                            preferred_element_type=jnp.float32)

    @pl.when(k == pl.num_programs(1) - 1)
    def _epilogue():
        # Exact mean: per-row 1/in_degree applied in f32 before the projection.
        agg = (acc_ref[...] * invdeg_ref[...]).astype(jnp.bfloat16)        # (tm, c_in)
        out = (jnp.dot(agg, wl_ref[...], preferred_element_type=jnp.float32)
               + jnp.dot(xdst_ref[...], wr_ref[...], preferred_element_type=jnp.float32)
               + b_ref[...])
        o_ref[...] = jnp.maximum(out, 0.0).astype(o_ref.dtype)             # ReLU after conv


def sage_layer(adj_i8, inv_deg, x_bf16, w_l, w_r, b, *, tm, tk, out_dtype):
    """out = relu(mean_agg(x) @ w_l + x @ w_r + b), tiled over (dst rows, src nodes)."""
    n_pad, c_in = x_bf16.shape
    c_out = w_l.shape[1]
    c_out_pad = _round_up(c_out, 128)          # lane-dense output / weight N dim

    wl = jnp.pad(w_l, ((0, 0), (0, c_out_pad - c_out))).astype(jnp.bfloat16)
    wr = jnp.pad(w_r, ((0, 0), (0, c_out_pad - c_out))).astype(jnp.bfloat16)
    bp = jnp.pad(b, (0, c_out_pad - c_out)).reshape(1, c_out_pad).astype(jnp.float32)

    grid = (n_pad // tm, n_pad // tk)
    out = pl.pallas_call(
        sage_layer_kernel,
        out_shape=jax.ShapeDtypeStruct((n_pad, c_out_pad), out_dtype),
        grid_spec=pltpu.PrefetchScalarGridSpec(
            num_scalar_prefetch=0,
            grid=grid,
            in_specs=[
                pl.BlockSpec((tm, tk), lambda i, k: (i, k)),             # int8 count tile
                pl.BlockSpec((tk, c_in), lambda i, k: (k, 0)),           # x source rows
                pl.BlockSpec((tm, c_in), lambda i, k: (i, 0)),           # x dest (root) rows
                pl.BlockSpec((tm, 1), lambda i, k: (i, 0)),              # 1/in_degree
                pl.BlockSpec((c_in, c_out_pad), lambda i, k: (0, 0)),    # W_l
                pl.BlockSpec((c_in, c_out_pad), lambda i, k: (0, 0)),    # W_r
                pl.BlockSpec((1, c_out_pad), lambda i, k: (0, 0)),       # bias
            ],
            out_specs=pl.BlockSpec((tm, c_out_pad), lambda i, k: (i, 0)),
            scratch_shapes=[pltpu.VMEM((tm, c_in), jnp.float32)],
        ),
        compiler_params=pltpu.CompilerParams(
            dimension_semantics=("parallel", "arbitrary"),
            vmem_limit_bytes=48 * 1024 * 1024,     # headroom for v7x's 64 MiB VMEM
        ),
    )(adj_i8, x_bf16, x_bf16, inv_deg, wl, wr, bp)
    return out  # (n_pad, c_out_pad); caller slices real rows/cols


def build_count_adjacency(edge_index, num_nodes, n_pad):
    """int8 edge-count adjacency A[i, j] = #edges j->i, plus f32 1/in_degree column.

    Built directly at int8 (no f32 N^2 intermediate). Zero in-degree rows get
    inv_deg = 1 (agg stays exactly 0, matching PyG mean aggregation). Padded
    rows/columns are all-zero.
    """
    src = edge_index[0]
    dst = edge_index[1]
    counts = jnp.zeros((n_pad, n_pad), jnp.int8).at[dst, src].add(
        jnp.ones_like(dst, dtype=jnp.int8))
    deg = jnp.zeros((n_pad,), jnp.float32).at[dst].add(1.0)
    inv_deg = (1.0 / jnp.maximum(deg, 1.0)).reshape(n_pad, 1)
    return counts, inv_deg


class GraphSAGEPallas:
    """Two SAGEConv layers (mean aggr, root weight, bias) with ReLU after each."""

    def __init__(self, in_channels, out_channels, key):
        k = jax.random.split(key, 4)

        def glorot(key, shape):
            lim = (6.0 / (shape[0] + shape[1])) ** 0.5
            return jax.random.uniform(key, shape, jnp.float32, -lim, lim)

        self.out_channels = out_channels
        self.w1_l = glorot(k[0], (in_channels, out_channels))
        self.w1_r = glorot(k[1], (in_channels, out_channels))
        self.b1 = jnp.zeros((out_channels,), jnp.float32)
        self.w2_l = glorot(k[2], (out_channels, out_channels))
        self.w2_r = glorot(k[3], (out_channels, out_channels))
        self.b2 = jnp.zeros((out_channels,), jnp.float32)

    def __call__(self, x, edge_index):
        n = x.shape[0]
        n_pad, tm, tk = _tile_plan(n)
        # Adjacency (int8 counts) + 1/deg built once and shared by both layers.
        adj, inv_deg = build_count_adjacency(edge_index, n, n_pad)
        x_pad = jnp.pad(x, ((0, n_pad - n), (0, 0))).astype(jnp.bfloat16)

        h = sage_layer(adj, inv_deg, x_pad, self.w1_l, self.w1_r, self.b1,
                       tm=tm, tk=tk, out_dtype=jnp.bfloat16)
        # Feed only the REAL feature columns into layer 2's contraction (lane
        # padding is a store-side concern, not a contraction-RHS one).
        h = h[:, : self.out_channels]
        out = sage_layer(adj, inv_deg, h, self.w2_l, self.w2_r, self.b2,
                         tm=tm, tk=tk, out_dtype=jnp.float32)
        return out[:n, : self.out_channels]


if __name__ == "__main__":
    key = jax.random.PRNGKey(0)
    k_x, k_src, k_dst, k_params = jax.random.split(key, 4)

    num_nodes = 32
    in_channels = 16
    out_channels = 32
    num_edges = 96

    x = jax.random.normal(k_x, (num_nodes, in_channels), jnp.float32)
    src = jax.random.randint(k_src, (num_edges,), 0, num_nodes, jnp.int32)
    dst = jax.random.randint(k_dst, (num_edges,), 0, num_nodes, jnp.int32)
    edge_index = jnp.stack([src, dst], axis=0)  # (2, E)

    model = GraphSAGEPallas(in_channels, out_channels, k_params)
    out = model(x, edge_index)
    out = jax.block_until_ready(out)

    assert out.shape == (num_nodes, out_channels)
    assert bool(jnp.all(out >= 0.0))  # ReLU output
    print("KERNEL_OK")
</pallas_src>

<mosaic_0001>
module attributes {stable_mosaic.version = 11 : i64} {
  func.func @sage_layer_kernel(%arg0: i32, %arg1: i32, %arg2: memref<128x128xi8, #tpu.memory_space<vmem>>, %arg3: memref<128x16xbf16, #tpu.memory_space<vmem>>, %arg4: memref<128x16xbf16, #tpu.memory_space<vmem>>, %arg5: memref<128x1xf32, #tpu.memory_space<vmem>>, %arg6: memref<16x128xbf16, #tpu.memory_space<vmem>>, %arg7: memref<16x128xbf16, #tpu.memory_space<vmem>>, %arg8: memref<1x128xf32, #tpu.memory_space<vmem>>, %arg9: memref<128x128xbf16, #tpu.memory_space<vmem>>, %arg10: memref<128x16xf32, #tpu.memory_space<vmem>>) attributes {dimension_semantics = [#tpu.dimension_semantics<parallel>, #tpu.dimension_semantics<arbitrary>], iteration_bounds = array<i64: 1, 1>, scalar_prefetch = 0 : i64, scratch_operands = 1 : i64, tpu.core_type = #tpu.core_type<tc>, window_params = [{transform_indices = @transform_0, window_bounds = array<i64: 128, 128>}, {transform_indices = @transform_1, window_bounds = array<i64: 128, 16>}, {transform_indices = @transform_2, window_bounds = array<i64: 128, 16>}, {transform_indices = @transform_3, window_bounds = array<i64: 128, 1>}, {pipeline_mode = #tpu.pipeline_mode<synchronous>, transform_indices = @transform_4, window_bounds = array<i64: 16, 128>}, {pipeline_mode = #tpu.pipeline_mode<synchronous>, transform_indices = @transform_5, window_bounds = array<i64: 16, 128>}, {pipeline_mode = #tpu.pipeline_mode<synchronous>, transform_indices = @transform_6, window_bounds = array<i64: 1, 128>}, {transform_indices = @transform_7, window_bounds = array<i64: 128, 128>}]} {
    %c0_i32 = arith.constant 0 : i32
    %0 = arith.cmpi eq, %arg1, %c0_i32 : i32
    %1 = arith.extui %0 : i1 to i32
    %c0_i32_0 = arith.constant 0 : i32
    %2 = arith.cmpi ne, %1, %c0_i32_0 : i32
    scf.if %2 {
      %cst_10 = arith.constant 0.000000e+00 : f32
      %13 = vector.broadcast %cst_10 : f32 to vector<128x16xf32>
      %c0_11 = arith.constant 0 : index
      %c0_12 = arith.constant 0 : index
      %14 = vector.load %arg10[%c0_11, %c0_12] : memref<128x16xf32, #tpu.memory_space<vmem>>, vector<128x16xf32>
      tpu.vector_store %arg10[%c0_11, %c0_12], %13 {strides = array<i32>} : memref<128x16xf32, #tpu.memory_space<vmem>>, vector<128x16xf32>,
    } else {
    }
    %c0 = arith.constant 0 : index
    %c0_1 = arith.constant 0 : index
    %3 = vector.load %arg10[%c0, %c0_1] : memref<128x16xf32, #tpu.memory_space<vmem>>, vector<128x16xf32>
    %c0_2 = arith.constant 0 : index
    %c0_3 = arith.constant 0 : index
    %4 = vector.load %arg2[%c0_2, %c0_3] : memref<128x128xi8, #tpu.memory_space<vmem>>, vector<128x128xi8>
    %5 = arith.sitofp %4 : vector<128x128xi8> to vector<128x128xbf16>
    %c0_4 = arith.constant 0 : index
    %c0_5 = arith.constant 0 : index
    %6 = vector.load %arg3[%c0_4, %c0_5] : memref<128x16xbf16, #tpu.memory_space<vmem>>, vector<128x16xbf16>
    %cst = arith.constant dense<0.000000e+00> : vector<128x16xf32>
    %7 = tpu.matmul %5, %6, %cst {dimension_numbers = #tpu.dot_dimension_numbers<[1], [0], [0], [1], [0, 0, 1, 1], [], []>} : vector<128x128xbf16>, vector<128x16xbf16>, vector<128x16xf32> -> vector<128x16xf32>
    %8 = arith.addf %3, %7 : vector<128x16xf32>
    %c0_6 = arith.constant 0 : index
    %c0_7 = arith.constant 0 : index
    %9 = vector.load %arg10[%c0_6, %c0_7] : memref<128x16xf32, #tpu.memory_space<vmem>>, vector<128x16xf32>
    tpu.vector_store %arg10[%c0_6, %c0_7], %8 {strides = array<i32>} : memref<128x16xf32, #tpu.memory_space<vmem>>, vector<128x16xf32>,
    %c0_i32_8 = arith.constant 0 : i32
    %10 = arith.cmpi eq, %arg1, %c0_i32_8 : i32
    %11 = arith.extui %10 : i1 to i32
    %c0_i32_9 = arith.constant 0 : i32
    %12 = arith.cmpi ne, %11, %c0_i32_9 : i32
    scf.if %12 {
      %c0_10 = arith.constant 0 : index
      %c0_11 = arith.constant 0 : index
      %13 = vector.load %arg10[%c0_10, %c0_11] : memref<128x16xf32, #tpu.memory_space<vmem>>, vector<128x16xf32>
      %c0_12 = arith.constant 0 : index
      %c0_13 = arith.constant 0 : index
      %14 = vector.load %arg5[%c0_12, %c0_13] : memref<128x1xf32, #tpu.memory_space<vmem>>, vector<128x1xf32>
      %15 = vector.broadcast %14 : vector<128x1xf32> to vector<128x16xf32>
      %16 = arith.mulf %13, %15 : vector<128x16xf32>
      %17 = arith.truncf %16 : vector<128x16xf32> to vector<128x16xbf16>
      %c0_14 = arith.constant 0 : index
      %c0_15 = arith.constant 0 : index
      %18 = vector.load %arg6[%c0_14, %c0_15] : memref<16x128xbf16, #tpu.memory_space<vmem>>, vector<16x128xbf16>
      %cst_16 = arith.constant dense<0.000000e+00> : vector<128x128xf32>
      %19 = tpu.matmul %17, %18, %cst_16 {dimension_numbers = #tpu.dot_dimension_numbers<[1], [0], [0], [1], [0, 0, 1, 1], [], []>} : vector<128x16xbf16>, vector<16x128xbf16>, vector<128x128xf32> -> vector<128x128xf32>
      %c0_17 = arith.constant 0 : index
      %c0_18 = arith.constant 0 : index
      %20 = vector.load %arg4[%c0_17, %c0_18] : memref<128x16xbf16, #tpu.memory_space<vmem>>, vector<128x16xbf16>
      %c0_19 = arith.constant 0 : index
      %c0_20 = arith.constant 0 : index
      %21 = vector.load %arg7[%c0_19, %c0_20] : memref<16x128xbf16, #tpu.memory_space<vmem>>, vector<16x128xbf16>
      %cst_21 = arith.constant dense<0.000000e+00> : vector<128x128xf32>
      %22 = tpu.matmul %20, %21, %cst_21 {dimension_numbers = #tpu.dot_dimension_numbers<[1], [0], [0], [1], [0, 0, 1, 1], [], []>} : vector<128x16xbf16>, vector<16x128xbf16>, vector<128x128xf32> -> vector<128x128xf32>
      %23 = arith.addf %19, %22 : vector<128x128xf32>
      %c0_22 = arith.constant 0 : index
      %c0_23 = arith.constant 0 : index
      %24 = vector.load %arg8[%c0_22, %c0_23] : memref<1x128xf32, #tpu.memory_space<vmem>>, vector<1x128xf32>
      %25 = vector.broadcast %24 : vector<1x128xf32> to vector<128x128xf32>
      %26 = arith.addf %23, %25 : vector<128x128xf32>
      %cst_24 = arith.constant 0.000000e+00 : f32
      %27 = vector.broadcast %cst_24 : f32 to vector<128x128xf32>
      %28 = arith.maximumf %26, %27 : vector<128x128xf32>
      %29 = arith.truncf %28 : vector<128x128xf32> to vector<128x128xbf16>
      %c0_25 = arith.constant 0 : index
      %c0_26 = arith.constant 0 : index
      %30 = vector.load %arg9[%c0_25, %c0_26] : memref<128x128xbf16, #tpu.memory_space<vmem>>, vector<128x128xbf16>
      tpu.vector_store %arg9[%c0_25, %c0_26], %29 {strides = array<i32>} : memref<128x128xbf16, #tpu.memory_space<vmem>>, vector<128x128xbf16>,
    } else {
    }
    return
  }
  func.func @transform_0(%arg0: i32, %arg1: i32) -> (i32, i32) {
    %c0_i32 = arith.constant 0 : i32
    return %arg0, %arg1 : i32, i32
  }
  func.func @transform_1(%arg0: i32, %arg1: i32) -> (i32, i32) {
    %c0_i32 = arith.constant 0 : i32
    %c0_i32_0 = arith.constant 0 : i32
    return %arg1, %c0_i32 : i32, i32
  }
  func.func @transform_2(%arg0: i32, %arg1: i32) -> (i32, i32) {
    %c0_i32 = arith.constant 0 : i32
    %c0_i32_0 = arith.constant 0 : i32
    return %arg0, %c0_i32 : i32, i32
  }
  func.func @transform_3(%arg0: i32, %arg1: i32) -> (i32, i32) {
    %c0_i32 = arith.constant 0 : i32
    %c0_i32_0 = arith.constant 0 : i32
    return %arg0, %c0_i32 : i32, i32
  }
  func.func @transform_4(%arg0: i32, %arg1: i32) -> (i32, i32) {
    %c0_i32 = arith.constant 0 : i32
    %c0_i32_0 = arith.constant 0 : i32
    %c0_i32_1 = arith.constant 0 : i32
    return %c0_i32, %c0_i32_0 : i32, i32
  }
  func.func @transform_5(%arg0: i32, %arg1: i32) -> (i32, i32) {
    %c0_i32 = arith.constant 0 : i32
    %c0_i32_0 = arith.constant 0 : i32
    %c0_i32_1 = arith.constant 0 : i32
    return %c0_i32, %c0_i32_0 : i32, i32
  }
  func.func @transform_6(%arg0: i32, %arg1: i32) -> (i32, i32) {
    %c0_i32 = arith.constant 0 : i32
    %c0_i32_0 = arith.constant 0 : i32
    %c0_i32_1 = arith.constant 0 : i32
    return %c0_i32, %c0_i32_0 : i32, i32
  }
  func.func @transform_7(%arg0: i32, %arg1: i32) -> (i32, i32) {
    %c0_i32 = arith.constant 0 : i32
    %c0_i32_0 = arith.constant 0 : i32
    return %arg0, %c0_i32 : i32, i32
  }
}

</mosaic_0001>

<llo_original>
// kernel: tpu_custom_call.1
$region0: #{tpu_custom_call.1}
  #allocation0 [shape = 'u32[]', space=smem, size = 0x4, offset = 0x4, fixed_abs, tag = 'smem constant byte address 0x4 - core index']
  #allocation1 [shape = 'u32[144,128]{1,0:T(1,128)}', space=vmem, size = 0x12000, scoped, tag = 'internal scratch']
  #allocation2 [shape = 'f32[128,16]{1,0:T(8,128)}', space=vmem, size = 0x10000, scoped, tag = 'scratch operand']
  %s0 = inlined_call_operand.vmem [shape: s8[128,128], index: 0, kind: input, shape index: {}]
  %s1 = inlined_call_operand.vmem [shape: bf16[128,16], index: 1, kind: input, shape index: {}]
  %s2 = inlined_call_operand.vmem [shape: bf16[128,16], index: 2, kind: input, shape index: {}]
  %s3 = inlined_call_operand.vmem [shape: f32[128,1], index: 3, kind: input, shape index: {}]
  %s4 = inlined_call_operand.vmem [shape: bf16[16,128], index: 4, kind: input, shape index: {}]
  %s5 = inlined_call_operand.vmem [shape: bf16[16,128], index: 5, kind: input, shape index: {}]
  %s6 = inlined_call_operand.vmem [shape: f32[1,128], index: 6, kind: input, shape index: {}]
  %s7 = inlined_call_operand.hbm [shape: bf16[128,128], index: 7, kind: output, shape index: {}]
  %s8 = sld [smem:[#allocation0]]
  $region46: #{tpu_custom_call.1} parent=0
    _
  %s10 = ssub.s32 1, %s8
  %s11 = scalar_select 0, %s10, %s8
  $region1: #{tpu_custom_call.1} parent=0
    #allocation3 [shape = 'u8[32768]{0}', space=vmem, size = 0x8000, scoped, tag = 'output window, operand 0, single buffered']
    #allocation4 [shape = 's32[1]{0}', space=sflag, size = 0x4, scoped, tag = 'scoped memory for tpu_custom_call.1']
    %12 = vsyncpa [#allocation4], 0
    // Predicated region
    $region2: #{tpu_custom_call.1} parent=1 // pred_check
      _
    $region3: #{tpu_custom_call.1} parent=1 // pred_check_branch
      %14 = sbr.rel (0) target = $region5
    $region4: #{tpu_custom_call.1} parent=1 // pred_region
      _
    $region5: #{tpu_custom_call.1} parent=1 // pred_fallthru
      _
    // Predicated region
    $region6: #{tpu_custom_call.1} parent=1 // pred_check
      _
    $region7: #{tpu_custom_call.1} parent=1 // pred_check_branch
      %16 = sbr.rel (0) target = $region9
    $region8: #{tpu_custom_call.1} parent=1 // pred_region
      _
    $region9: #{tpu_custom_call.1} parent=1 // pred_fallthru
      _
    // Predicated region
    $region10: #{tpu_custom_call.1} parent=1 // pred_check
      _
    $region11: #{tpu_custom_call.1} parent=1 // pred_check_branch
      %18 = sbr.rel (0) target = $region13
    $region12: #{tpu_custom_call.1} parent=1 // pred_region
      _
    $region13: #{tpu_custom_call.1} parent=1 // pred_fallthru
      _
    // Predicated region
    $region14: #{tpu_custom_call.1} parent=1 // pred_check
      _
    $region15: #{tpu_custom_call.1} parent=1 // pred_check_branch
      %20 = sbr.rel (0) target = $region17
    $region16: #{tpu_custom_call.1} parent=1 // pred_region
      _
    $region17: #{tpu_custom_call.1} parent=1 // pred_fallthru
      _
    // Predicated region
    $region18: #{tpu_custom_call.1} parent=1 // pred_check
      _
    $region19: #{tpu_custom_call.1} parent=1 // pred_check_branch
      %22 = sbr.rel (0) target = $region21
    $region20: #{tpu_custom_call.1} parent=1 // pred_region
      _
    $region21: #{tpu_custom_call.1} parent=1 // pred_fallthru
      _
    // Predicated region
    $region22: #{tpu_custom_call.1} parent=1 // pred_check
      _
    $region23: #{tpu_custom_call.1} parent=1 // pred_check_branch
      %24 = sbr.rel (0) target = $region25
    $region24: #{tpu_custom_call.1} parent=1 // pred_region
      _
    $region25: #{tpu_custom_call.1} parent=1 // pred_fallthru
      _
    // Predicated region
    $region26: #{tpu_custom_call.1} parent=1 // pred_check
      _
    $region27: #{tpu_custom_call.1} parent=1 // pred_check_branch
      %26 = sbr.rel (0) target = $region29
    $region28: #{tpu_custom_call.1} parent=1 // pred_region
      _
    $region29: #{tpu_custom_call.1} parent=1 // pred_fallthru
      _
    %p28 = scmp.eq.s32.totalorder 0, 0
    // Predicated region
    $region30: #{tpu_custom_call.1} parent=1 // pred_check
      %p29 = pneg %p28
    $region31: #{tpu_custom_call.1} parent=1 // pred_check_branch
      %31 = sbr.rel (%p29) target = $region33
    $region32: #{tpu_custom_call.1} parent=1 // pred_region
      %vm32 = vcmask 130048
      %33 = vst.msk [vmem:[#allocation2] sm:$0xff] %vm32, 0.0
      %34 = vst.msk [vmem:[#allocation2 + $0x8] sm:$0xff] %vm32, 0.0
      %35 = vst.msk [vmem:[#allocation2 + $0x10] sm:$0xff] %vm32, 0.0
      %36 = vst.msk [vmem:[#allocation2 + $0x18] sm:$0xff] %vm32, 0.0
      %37 = vst.msk [vmem:[#allocation2 + $0x20] sm:$0xff] %vm32, 0.0
      %38 = vst.msk [vmem:[#allocation2 + $0x28] sm:$0xff] %vm32, 0.0
      %39 = vst.msk [vmem:[#allocation2 + $0x30] sm:$0xff] %vm32, 0.0
      %40 = vst.msk [vmem:[#allocation2 + $0x38] sm:$0xff] %vm32, 0.0
      %41 = vst.msk [vmem:[#allocation2 + $0x40] sm:$0xff] %vm32, 0.0
      %42 = vst.msk [vmem:[#allocation2 + $0x48] sm:$0xff] %vm32, 0.0
      %43 = vst.msk [vmem:[#allocation2 + $0x50] sm:$0xff] %vm32, 0.0
      %44 = vst.msk [vmem:[#allocation2 + $0x58] sm:$0xff] %vm32, 0.0
      %45 = vst.msk [vmem:[#allocation2 + $0x60] sm:$0xff] %vm32, 0.0
      %46 = vst.msk [vmem:[#allocation2 + $0x68] sm:$0xff] %vm32, 0.0
      %47 = vst.msk [vmem:[#allocation2 + $0x70] sm:$0xff] %vm32, 0.0
      %48 = vst.msk [vmem:[#allocation2 + $0x78] sm:$0xff] %vm32, 0.0
    $region33: #{tpu_custom_call.1} parent=1 // pred_fallthru
      _
    %v49 = vld [vmem:[#allocation2] sm:$0xff]
    %v50 = vld [vmem:[#allocation2 + $0x8] sm:$0xff]
    %v51 = vld [vmem:[#allocation2 + $0x10] sm:$0xff]
    %v52 = vld [vmem:[#allocation2 + $0x18] sm:$0xff]
    %v53 = vld [vmem:[#allocation2 + $0x20] sm:$0xff]
    %v54 = vld [vmem:[#allocation2 + $0x28] sm:$0xff]
    %v55 = vld [vmem:[#allocation2 + $0x30] sm:$0xff]
    %v56 = vld [vmem:[#allocation2 + $0x38] sm:$0xff]
    %v57 = vld [vmem:[#allocation2 + $0x40] sm:$0xff]
    %v58 = vld [vmem:[#allocation2 + $0x48] sm:$0xff]
    %v59 = vld [vmem:[#allocation2 + $0x50] sm:$0xff]
    %v60 = vld [vmem:[#allocation2 + $0x58] sm:$0xff]
    %v61 = vld [vmem:[#allocation2 + $0x60] sm:$0xff]
    %v62 = vld [vmem:[#allocation2 + $0x68] sm:$0xff]
    %v63 = vld [vmem:[#allocation2 + $0x70] sm:$0xff]
    %v64 = vld [vmem:[#allocation2 + $0x78] sm:$0xff]
    %v65 = vld [vmem:[%s0] sm:$0xff]
    %v66 = vld [vmem:[%s0 + $0x8] sm:$0xff]
    %v67 = vld [vmem:[%s0 + $0x10] sm:$0xff]
    %v68 = vld [vmem:[%s0 + $0x18] sm:$0xff]
    %v69 = vunpack.c.l.s8.bf16 %v65
    %v70 = vunpack.c.h.s8.bf16 %v65
    %v71 = vunpack.c.l.s8.bf16 %v66
    %v72 = vunpack.c.h.s8.bf16 %v66
    %v73 = vunpack.c.l.s8.bf16 %v67
    %v74 = vunpack.c.h.s8.bf16 %v67
    %v75 = vunpack.c.l.s8.bf16 %v68
    %v76 = vunpack.c.h.s8.bf16 %v68
    %v77 = vld [vmem:[%s1] sm:$0xf]
    %v78 = vld [vmem:[%s1 + $0x4] sm:$0xf]
    %v79 = vld [vmem:[%s1 + $0x8] sm:$0xf]
    %v80 = vld [vmem:[%s1 + $0xc] sm:$0xf]
    %v81 = vld [vmem:[%s1 + $0x10] sm:$0xf]
    %v82 = vld [vmem:[%s1 + $0x14] sm:$0xf]
    %v83 = vld [vmem:[%s1 + $0x18] sm:$0xf]
    %v84 = vld [vmem:[%s1 + $0x1c] sm:$0xf]
    %v85 = vld [vmem:[%s1 + $0x20] sm:$0xf]
    %v86 = vld [vmem:[%s1 + $0x24] sm:$0xf]
    %v87 = vld [vmem:[%s1 + $0x28] sm:$0xf]
    %v88 = vld [vmem:[%s1 + $0x2c] sm:$0xf]
    %v89 = vld [vmem:[%s1 + $0x30] sm:$0xf]
    %v90 = vld [vmem:[%s1 + $0x34] sm:$0xf]
    %v91 = vld [vmem:[%s1 + $0x38] sm:$0xf]
    %v92 = vld [vmem:[%s1 + $0x3c] sm:$0xf]
    %v109 = vunpack.c.l.b16 %v77
    %v110 = vunpack.c.l.b16 %v78
    %v111 = vunpack.c.l.b16 %v79
    %v112 = vunpack.c.l.b16 %v80
    %v113 = vunpack.c.l.b16 %v81
    %v114 = vunpack.c.l.b16 %v82
    %v115 = vunpack.c.l.b16 %v83
    %v116 = vunpack.c.l.b16 %v84
    %v117 = vunpack.c.l.b16 %v85
    %v118 = vunpack.c.l.b16 %v86
    %v119 = vunpack.c.l.b16 %v87
    %v120 = vunpack.c.l.b16 %v88
    %v121 = vunpack.c.l.b16 %v89
    %v122 = vunpack.c.l.b16 %v90
    %v123 = vunpack.c.l.b16 %v91
    %v124 = vunpack.c.l.b16 %v92
    %v125 = vpack.c.b16 %v110, %v109
    %v126 = vpack.c.b16 %v112, %v111
    %v127 = vpack.c.b16 %v114, %v113
    %v128 = vpack.c.b16 %v116, %v115
    %v129 = vpack.c.b16 %v118, %v117
    %v130 = vpack.c.b16 %v120, %v119
    %v131 = vpack.c.b16 %v122, %v121
    %v132 = vpack.c.b16 %v124, %v123
    %141 = vmatprep.subr.bf16.mxu0 0
    %142 = vmatpush1.bf16.msra.mxu0 %v132
    %143 = vmatprep.subr.bf16.mxu0 0
    %144 = vmatpush1.bf16.msra.mxu0 %v131
    %145 = vmatprep.subr.bf16.mxu0 0
    %146 = vmatpush1.bf16.msra.mxu0 %v130
    %147 = vmatprep.subr.bf16.mxu0 0
    %148 = vmatpush1.bf16.msra.mxu0 %v129
    %149 = vmatprep.subr.bf16.mxu0 0
    %150 = vmatpush1.bf16.msra.mxu0 %v128
    %151 = vmatprep.subr.bf16.mxu0 0
    %152 = vmatpush1.bf16.msra.mxu0 %v127
    %153 = vmatprep.subr.bf16.mxu0 0
    %154 = vmatpush1.bf16.msra.mxu0 %v126
    %155 = vmatprep.subr.bf16.mxu0 0
    %156 = vmatpush1.bf16.msra.mxu0 %v125
    %157 = vmatprep.subr.bf16.mxu0 0
    %158 = vmatpush2.bf16.msra.mxu0 0
    %159 = vmatprep.subr.bf16.mxu0 0
    %160 = vmatpush2.bf16.msra.mxu0 0
    %161 = vmatprep.subr.bf16.mxu0 0
    %162 = vmatpush2.bf16.msra.mxu0 0
    %163 = vmatprep.subr.bf16.mxu0 0
    %164 = vmatpush2.bf16.msra.mxu0 0
    %165 = vmatprep.subr.bf16.mxu0 0
    %166 = vmatpush2.bf16.msra.mxu0 0
    %167 = vmatprep.subr.bf16.mxu0 0
    %168 = vmatpush2.bf16.msra.mxu0 0
    %169 = vmatprep.subr.bf16.mxu0 0
    %170 = vmatpush2.bf16.msra.mxu0 0
    %171 = vmatprep.subr.bf16.mxu0 0
    %172 = vmatpush2.bf16.msra.mxu0 0
    %173 = vmatprep.mubr.bf16.mxu0 0
    %174 = vmatmul.mubr.bf16.gmra.mxu0 %v69
    %v175 = vpop.f32.mrf.mxu0
    %v176 = vadd.f32 0.0, %v175
    %v177 = vpop.f32.mrf.mxu0
    %v178 = vpop.f32.mrf.mxu0
    %v179 = vadd.f32 0.0, %v178
    %v180 = vpop.f32.mrf.mxu0
    %181 = vmatprep.mubr.bf16.mxu0 0
    %182 = vmatmul.mubr.bf16.gmra.mxu0 %v70
    %v183 = vpop.f32.mrf.mxu0
    %v184 = vadd.f32 0.0, %v183
    %v185 = vpop.f32.mrf.mxu0
    %v186 = vpop.f32.mrf.mxu0
    %v187 = vadd.f32 0.0, %v186
    %v188 = vpop.f32.mrf.mxu0
    %189 = vmatprep.mubr.bf16.mxu0 0
    %190 = vmatmul.mubr.bf16.gmra.mxu0 %v71
    %v191 = vpop.f32.mrf.mxu0
    %v192 = vadd.f32 0.0, %v191
    %v193 = vpop.f32.mrf.mxu0
    %v194 = vpop.f32.mrf.mxu0
    %v195 = vadd.f32 0.0, %v194
    %v196 = vpop.f32.mrf.mxu0
    %197 = vmatprep.mubr.bf16.mxu0 0
    %198 = vmatmul.mubr.bf16.gmra.mxu0 %v72
    %v199 = vpop.f32.mrf.mxu0
    %v200 = vadd.f32 0.0, %v199
    %v201 = vpop.f32.mrf.mxu0
    %v202 = vpop.f32.mrf.mxu0
    %v203 = vadd.f32 0.0, %v202
    %v204 = vpop.f32.mrf.mxu0
    %205 = vmatprep.mubr.bf16.mxu0 0
    %206 = vmatmul.mubr.bf16.gmra.mxu0 %v73
    %v207 = vpop.f32.mrf.mxu0
    %v208 = vadd.f32 0.0, %v207
    %v209 = vpop.f32.mrf.mxu0
    %v210 = vpop.f32.mrf.mxu0
    %v211 = vadd.f32 0.0, %v210
    %v212 = vpop.f32.mrf.mxu0
    %213 = vmatprep.mubr.bf16.mxu0 0
    %214 = vmatmul.mubr.bf16.gmra.mxu0 %v74
    %v215 = vpop.f32.mrf.mxu0
    %v216 = vadd.f32 0.0, %v215
    %v217 = vpop.f32.mrf.mxu0
    %v218 = vpop.f32.mrf.mxu0
    %v219 = vadd.f32 0.0, %v218
    %v220 = vpop.f32.mrf.mxu0
    %221 = vmatprep.mubr.bf16.mxu0 0
    %222 = vmatmul.mubr.bf16.gmra.mxu0 %v75
    %v223 = vpop.f32.mrf.mxu0
    %v224 = vadd.f32 0.0, %v223
    %v225 = vpop.f32.mrf.mxu0
    %v226 = vpop.f32.mrf.mxu0
    %v227 = vadd.f32 0.0, %v226
    %v228 = vpop.f32.mrf.mxu0
    %229 = vmatprep.mubr.bf16.mxu0 0
    %230 = vmatmul.mubr.bf16.gmra.mxu0 %v76
    %v231 = vpop.f32.mrf.mxu0
    %v232 = vadd.f32 0.0, %v231
    %v233 = vpop.f32.mrf.mxu0
    %v234 = vpop.f32.mrf.mxu0
    %v235 = vadd.f32 0.0, %v234
    %v236 = vpop.f32.mrf.mxu0
    %237 = vdwg.mxu0
    %v238 = vadd.f32 %v49, %v176
    %v239 = vadd.f32 %v50, %v179
    %v240 = vadd.f32 %v51, %v184
    %v241 = vadd.f32 %v52, %v187
    %v242 = vadd.f32 %v53, %v192
    %v243 = vadd.f32 %v54, %v195
    %v244 = vadd.f32 %v55, %v200
    %v245 = vadd.f32 %v56, %v203
    %v246 = vadd.f32 %v57, %v208
    %v247 = vadd.f32 %v58, %v211
    %v248 = vadd.f32 %v59, %v216
    %v249 = vadd.f32 %v60, %v219
    %v250 = vadd.f32 %v61, %v224
    %v251 = vadd.f32 %v62, %v227
    %v252 = vadd.f32 %v63, %v232
    %v253 = vadd.f32 %v64, %v235
    %vm254 = vcmask 130048
    %255 = vst.msk [vmem:[#allocation2] sm:$0xff] %vm254, %v238
    %256 = vst.msk [vmem:[#allocation2 + $0x8] sm:$0xff] %vm254, %v239
    %257 = vst.msk [vmem:[#allocation2 + $0x10] sm:$0xff] %vm254, %v240
    %258 = vst.msk [vmem:[#allocation2 + $0x18] sm:$0xff] %vm254, %v241
    %259 = vst.msk [vmem:[#allocation2 + $0x20] sm:$0xff] %vm254, %v242
    %260 = vst.msk [vmem:[#allocation2 + $0x28] sm:$0xff] %vm254, %v243
    %261 = vst.msk [vmem:[#allocation2 + $0x30] sm:$0xff] %vm254, %v244
    %262 = vst.msk [vmem:[#allocation2 + $0x38] sm:$0xff] %vm254, %v245
    %263 = vst.msk [vmem:[#allocation2 + $0x40] sm:$0xff] %vm254, %v246
    %264 = vst.msk [vmem:[#allocation2 + $0x48] sm:$0xff] %vm254, %v247
    %265 = vst.msk [vmem:[#allocation2 + $0x50] sm:$0xff] %vm254, %v248
    %266 = vst.msk [vmem:[#allocation2 + $0x58] sm:$0xff] %vm254, %v249
    %267 = vst.msk [vmem:[#allocation2 + $0x60] sm:$0xff] %vm254, %v250
    %268 = vst.msk [vmem:[#allocation2 + $0x68] sm:$0xff] %vm254, %v251
    %269 = vst.msk [vmem:[#allocation2 + $0x70] sm:$0xff] %vm254, %v252
    %270 = vst.msk [vmem:[#allocation2 + $0x78] sm:$0xff] %vm254, %v253
    // Predicated region
    $region34: #{tpu_custom_call.1} parent=1 // pred_check
      %p271 = pneg %p28
    $region35: #{tpu_custom_call.1} parent=1 // pred_check_branch
      %273 = sbr.rel (%p271) target = $region37
    $region36: #{tpu_custom_call.1} parent=1 // pred_region
      %v274 = vld [vmem:[#allocation2] sm:$0xff]
      %v275 = vld [vmem:[#allocation2 + $0x8] sm:$0xff]
      %v276 = vld [vmem:[#allocation2 + $0x10] sm:$0xff]
      %v277 = vld [vmem:[#allocation2 + $0x18] sm:$0xff]
      %v278 = vld [vmem:[#allocation2 + $0x20] sm:$0xff]
      %v279 = vld [vmem:[#allocation2 + $0x28] sm:$0xff]
      %v280 = vld [vmem:[#allocation2 + $0x30] sm:$0xff]
      %v281 = vld [vmem:[#allocation2 + $0x38] sm:$0xff]
      %v282 = vld [vmem:[#allocation2 + $0x40] sm:$0xff]
      %v283 = vld [vmem:[#allocation2 + $0x48] sm:$0xff]
      %v284 = vld [vmem:[#allocation2 + $0x50] sm:$0xff]
      %v285 = vld [vmem:[#allocation2 + $0x58] sm:$0xff]
      %v286 = vld [vmem:[#allocation2 + $0x60] sm:$0xff]
      %v287 = vld [vmem:[#allocation2 + $0x68] sm:$0xff]
      %v288 = vld [vmem:[#allocation2 + $0x70] sm:$0xff]
      %v289 = vld [vmem:[#allocation2 + $0x78] sm:$0xff]
      %v290 = vld [vmem:[%s3] sm:$0xff]
      %v291 = vld [vmem:[%s3 + $0x8] sm:$0xff]
      %v292 = vld [vmem:[%s3 + $0x10] sm:$0xff]
      %v293 = vld [vmem:[%s3 + $0x18] sm:$0xff]
      %v294 = vld [vmem:[%s3 + $0x20] sm:$0xff]
      %v295 = vld [vmem:[%s3 + $0x28] sm:$0xff]
      %v296 = vld [vmem:[%s3 + $0x30] sm:$0xff]
      %v297 = vld [vmem:[%s3 + $0x38] sm:$0xff]
      %v298 = vld [vmem:[%s3 + $0x40] sm:$0xff]
      %v299 = vld [vmem:[%s3 + $0x48] sm:$0xff]
      %v300 = vld [vmem:[%s3 + $0x50] sm:$0xff]
      %v301 = vld [vmem:[%s3 + $0x58] sm:$0xff]
      %v302 = vld [vmem:[%s3 + $0x60] sm:$0xff]
      %v303 = vld [vmem:[%s3 + $0x68] sm:$0xff]
      %v304 = vld [vmem:[%s3 + $0x70] sm:$0xff]
      %v305 = vld [vmem:[%s3 + $0x78] sm:$0xff]
      %307 = vset.pattern.permute.xlu0 0
      %308 = vperm.xlu0 %307, %v290
      %v309 = vpop.permute.xlu0 %308
      %312 = vset.pattern.permute.xlu0 0
      %313 = vperm.xlu0 %312, %v291
      %v314 = vpop.permute.xlu0 %313
      %317 = vset.pattern.permute.xlu0 0
      %318 = vperm.xlu0 %317, %v292
      %v319 = vpop.permute.xlu0 %318
      %322 = vset.pattern.permute.xlu0 0
      %323 = vperm.xlu0 %322, %v293
      %v324 = vpop.permute.xlu0 %323
      %327 = vset.pattern.permute.xlu0 0
      %328 = vperm.xlu0 %327, %v294
      %v329 = vpop.permute.xlu0 %328
      %332 = vset.pattern.permute.xlu0 0
      %333 = vperm.xlu0 %332, %v295
      %v334 = vpop.permute.xlu0 %333
      %337 = vset.pattern.permute.xlu0 0
      %338 = vperm.xlu0 %337, %v296
      %v339 = vpop.permute.xlu0 %338
      %342 = vset.pattern.permute.xlu0 0
      %343 = vperm.xlu0 %342, %v297
      %v344 = vpop.permute.xlu0 %343
      %347 = vset.pattern.permute.xlu0 0
      %348 = vperm.xlu0 %347, %v298
      %v349 = vpop.permute.xlu0 %348
      %352 = vset.pattern.permute.xlu0 0
      %353 = vperm.xlu0 %352, %v299
      %v354 = vpop.permute.xlu0 %353
      %357 = vset.pattern.permute.xlu0 0
      %358 = vperm.xlu0 %357, %v300
      %v359 = vpop.permute.xlu0 %358
      %362 = vset.pattern.permute.xlu0 0
      %363 = vperm.xlu0 %362, %v301
      %v364 = vpop.permute.xlu0 %363
      %367 = vset.pattern.permute.xlu0 0
      %368 = vperm.xlu0 %367, %v302
      %v369 = vpop.permute.xlu0 %368
      %372 = vset.pattern.permute.xlu0 0
      %373 = vperm.xlu0 %372, %v303
      %v374 = vpop.permute.xlu0 %373
      %377 = vset.pattern.permute.xlu0 0
      %378 = vperm.xlu0 %377, %v304
      %v379 = vpop.permute.xlu0 %378
      %382 = vset.pattern.permute.xlu0 0
      %383 = vperm.xlu0 %382, %v305
      %v384 = vpop.permute.xlu0 %383
      %v386 = vmul.f32 %v274, %v309
      %v387 = vmul.f32 %v275, %v314
      %v388 = vmul.f32 %v276, %v319
      %v389 = vmul.f32 %v277, %v324
      %v390 = vmul.f32 %v278, %v329
      %v391 = vmul.f32 %v279, %v334
      %v392 = vmul.f32 %v280, %v339
      %v393 = vmul.f32 %v281, %v344
      %v394 = vmul.f32 %v282, %v349
      %v395 = vmul.f32 %v283, %v354
      %v396 = vmul.f32 %v284, %v359
      %v397 = vmul.f32 %v285, %v364
      %v398 = vmul.f32 %v286, %v369
      %v399 = vmul.f32 %v287, %v374
      %v400 = vmul.f32 %v288, %v379
      %v401 = vmul.f32 %v289, %v384
      %v402 = vpack.c.bf16 %v387, %v386
      %v403 = vpack.c.bf16 %v389, %v388
      %v404 = vpack.c.bf16 %v391, %v390
      %v405 = vpack.c.bf16 %v393, %v392
      %v406 = vpack.c.bf16 %v395, %v394
      %v407 = vpack.c.bf16 %v397, %v396
      %v408 = vpack.c.bf16 %v399, %v398
      %v409 = vpack.c.bf16 %v401, %v400
      %v410 = vld [vmem:[%s4] sm:$0xf]
      %v411 = vld [vmem:[%s4 + $0x4] sm:$0xf]
      %v412 = vld [vmem:[%s2] sm:$0xf]
      %v413 = vld [vmem:[%s2 + $0x4] sm:$0xf]
      %v414 = vld [vmem:[%s2 + $0x8] sm:$0xf]
      %v415 = vld [vmem:[%s2 + $0xc] sm:$0xf]
      %v416 = vld [vmem:[%s2 + $0x10] sm:$0xf]
      %v417 = vld [vmem:[%s2 + $0x14] sm:$0xf]
      %v418 = vld [vmem:[%s2 + $0x18] sm:$0xf]
      %v419 = vld [vmem:[%s2 + $0x1c] sm:$0xf]
      %v420 = vld [vmem:[%s2 + $0x20] sm:$0xf]
      %v421 = vld [vmem:[%s2 + $0x24] sm:$0xf]
      %v422 = vld [vmem:[%s2 + $0x28] sm:$0xf]
      %v423 = vld [vmem:[%s2 + $0x2c] sm:$0xf]
      %v424 = vld [vmem:[%s2 + $0x30] sm:$0xf]
      %v425 = vld [vmem:[%s2 + $0x34] sm:$0xf]
      %v426 = vld [vmem:[%s2 + $0x38] sm:$0xf]
      %v427 = vld [vmem:[%s2 + $0x3c] sm:$0xf]
      %v428 = vld [vmem:[%s5] sm:$0xf]
      %v429 = vld [vmem:[%s5 + $0x4] sm:$0xf]
      %v446 = vunpack.c.l.b16 %v412
      %v447 = vunpack.c.l.b16 %v413
      %v448 = vunpack.c.l.b16 %v414
      %v449 = vunpack.c.l.b16 %v415
      %v450 = vunpack.c.l.b16 %v416
      %v451 = vunpack.c.l.b16 %v417
      %v452 = vunpack.c.l.b16 %v418
      %v453 = vunpack.c.l.b16 %v419
      %v454 = vunpack.c.l.b16 %v420
      %v455 = vunpack.c.l.b16 %v421
      %v456 = vunpack.c.l.b16 %v422
      %v457 = vunpack.c.l.b16 %v423
      %v458 = vunpack.c.l.b16 %v424
      %v459 = vunpack.c.l.b16 %v425
      %v460 = vunpack.c.l.b16 %v426
      %v461 = vunpack.c.l.b16 %v427
      %v462 = vpack.c.b16 %v447, %v446
      %v463 = vpack.c.b16 %v449, %v448
      %v464 = vpack.c.b16 %v451, %v450
      %v465 = vpack.c.b16 %v453, %v452
      %v466 = vpack.c.b16 %v455, %v454
      %v467 = vpack.c.b16 %v457, %v456
      %v468 = vpack.c.b16 %v459, %v458
      %v469 = vpack.c.b16 %v461, %v460
      %v472 = vunpack.c.l.b16 %v428
      %v473 = vunpack.c.l.b16 %v429
      %v474 = vpack.c.b16 %v473, %v472
      %v477 = vsel %vm254, %v462, 0
      %v480 = vsel %vm254, %v463, 0
      %v483 = vsel %vm254, %v464, 0
      %v486 = vsel %vm254, %v465, 0
      %v489 = vsel %vm254, %v466, 0
      %v492 = vsel %vm254, %v467, 0
      %v495 = vsel %vm254, %v468, 0
      %v498 = vsel %vm254, %v469, 0
      %500 = vmatprep.subr.bf16.mxu0 0
      %501 = vmatpush1.bf16.msra.mxu0 0
      %502 = vmatprep.subr.bf16.mxu0 0
      %503 = vmatpush1.bf16.msra.mxu0 0
      %504 = vmatprep.subr.bf16.mxu0 0
      %505 = vmatpush1.bf16.msra.mxu0 0
      %506 = vmatprep.subr.bf16.mxu0 0
      %507 = vmatpush1.bf16.msra.mxu0 0
      %508 = vmatprep.subr.bf16.mxu0 0
      %509 = vmatpush1.bf16.msra.mxu0 0
      %510 = vmatprep.subr.bf16.mxu0 0
      %511 = vmatpush1.bf16.msra.mxu0 0
      %512 = vmatprep.subr.bf16.mxu0 0
      %513 = vmatpush1.bf16.msra.mxu0 0
      %514 = vmatprep.subr.bf16.mxu0 0
      %515 = vmatpush1.bf16.msra.mxu0 %v474
      %516 = vmatprep.subr.bf16.mxu0 0
      %517 = vmatpush2.bf16.msra.mxu0 0
      %518 = vmatprep.subr.bf16.mxu0 0
      %519 = vmatpush2.bf16.msra.mxu0 0
      %520 = vmatprep.subr.bf16.mxu0 0
      %521 = vmatpush2.bf16.msra.mxu0 0
      %522 = vmatprep.subr.bf16.mxu0 0
      %523 = vmatpush2.bf16.msra.mxu0 0
      %524 = vmatprep.subr.bf16.mxu0 0
      %525 = vmatpush2.bf16.msra.mxu0 0
      %526 = vmatprep.subr.bf16.mxu0 0
      %527 = vmatpush2.bf16.msra.mxu0 0
      %528 = vmatprep.subr.bf16.mxu0 0
      %529 = vmatpush2.bf16.msra.mxu0 0
      %530 = vmatprep.subr.bf16.mxu0 0
      %531 = vmatpush2.bf16.msra.mxu0 0
      %532 = vmatprep.mubr.bf16.mxu0 0
      %533 = vmatmul.mubr.bf16.gmra.mxu0 %v477
      %v534 = vpop.f32.mrf.mxu0
      %v535 = vadd.f32 0.0, %v534
      %v536 = vpop.f32.mrf.mxu0
      %v537 = vpop.f32.mrf.mxu0
      %v538 = vadd.f32 0.0, %v537
      %v539 = vpop.f32.mrf.mxu0
      %540 = vmatprep.mubr.bf16.mxu0 0
      %541 = vmatmul.mubr.bf16.gmra.mxu0 %v480
      %v542 = vpop.f32.mrf.mxu0
      %v543 = vadd.f32 0.0, %v542
      %v544 = vpop.f32.mrf.mxu0
      %v545 = vpop.f32.mrf.mxu0
      %v546 = vadd.f32 0.0, %v545
      %v547 = vpop.f32.mrf.mxu0
      %548 = vmatprep.mubr.bf16.mxu0 0
      %549 = vmatmul.mubr.bf16.gmra.mxu0 %v483
      %v550 = vpop.f32.mrf.mxu0
      %v551 = vadd.f32 0.0, %v550
      %v552 = vpop.f32.mrf.mxu0
      %v553 = vpop.f32.mrf.mxu0
      %v554 = vadd.f32 0.0, %v553
      %v555 = vpop.f32.mrf.mxu0
      %556 = vmatprep.mubr.bf16.mxu0 0
      %557 = vmatmul.mubr.bf16.gmra.mxu0 %v486
      %v558 = vpop.f32.mrf.mxu0
      %v559 = vadd.f32 0.0, %v558
      %v560 = vpop.f32.mrf.mxu0
      %v561 = vpop.f32.mrf.mxu0
      %v562 = vadd.f32 0.0, %v561
      %v563 = vpop.f32.mrf.mxu0
      %564 = vmatprep.mubr.bf16.mxu0 0
      %565 = vmatmul.mubr.bf16.gmra.mxu0 %v489
      %v566 = vpop.f32.mrf.mxu0
      %v567 = vadd.f32 0.0, %v566
      %v568 = vpop.f32.mrf.mxu0
      %v569 = vpop.f32.mrf.mxu0
      %v570 = vadd.f32 0.0, %v569
      %v571 = vpop.f32.mrf.mxu0
      %572 = vmatprep.mubr.bf16.mxu0 0
      %573 = vmatmul.mubr.bf16.gmra.mxu0 %v492
      %v574 = vpop.f32.mrf.mxu0
      %v575 = vadd.f32 0.0, %v574
      %v576 = vpop.f32.mrf.mxu0
      %v577 = vpop.f32.mrf.mxu0
      %v578 = vadd.f32 0.0, %v577
      %v579 = vpop.f32.mrf.mxu0
      %580 = vmatprep.mubr.bf16.mxu0 0
      %581 = vmatmul.mubr.bf16.gmra.mxu0 %v495
      %v582 = vpop.f32.mrf.mxu0
      %v583 = vadd.f32 0.0, %v582
      %v584 = vpop.f32.mrf.mxu0
      %v585 = vpop.f32.mrf.mxu0
      %v586 = vadd.f32 0.0, %v585
      %v587 = vpop.f32.mrf.mxu0
      %588 = vmatprep.mubr.bf16.mxu0 0
      %589 = vmatmul.mubr.bf16.gmra.mxu0 %v498
      %v590 = vpop.f32.mrf.mxu0
      %v591 = vadd.f32 0.0, %v590
      %v592 = vpop.f32.mrf.mxu0
      %v593 = vpop.f32.mrf.mxu0
      %v594 = vadd.f32 0.0, %v593
      %v595 = vpop.f32.mrf.mxu0
      %596 = vdwg.mxu0
      %v599 = vunpack.c.l.b16 %v410
      %v600 = vunpack.c.l.b16 %v411
      %v601 = vpack.c.b16 %v600, %v599
      %v604 = vsel %vm254, %v402, 0
      %v607 = vsel %vm254, %v403, 0
      %v610 = vsel %vm254, %v404, 0
      %v613 = vsel %vm254, %v405, 0
      %v616 = vsel %vm254, %v406, 0
      %v619 = vsel %vm254, %v407, 0
      %v622 = vsel %vm254, %v408, 0
      %v625 = vsel %vm254, %v409, 0
      %627 = vmatprep.subr.bf16.mxu0 0
      %628 = vmatpush1.bf16.msra.mxu0 0
      %629 = vmatprep.subr.bf16.mxu0 0
      %630 = vmatpush1.bf16.msra.mxu0 0
      %631 = vmatprep.subr.bf16.mxu0 0
      %632 = vmatpush1.bf16.msra.mxu0 0
      %633 = vmatprep.subr.bf16.mxu0 0
      %634 = vmatpush1.bf16.msra.mxu0 0
      %635 = vmatprep.subr.bf16.mxu0 0
      %636 = vmatpush1.bf16.msra.mxu0 0
      %637 = vmatprep.subr.bf16.mxu0 0
      %638 = vmatpush1.bf16.msra.mxu0 0
      %639 = vmatprep.subr.bf16.mxu0 0
      %640 = vmatpush1.bf16.msra.mxu0 0
      %641 = vmatprep.subr.bf16.mxu0 0
      %642 = vmatpush1.bf16.msra.mxu0 %v601
      %643 = vmatprep.subr.bf16.mxu0 0
      %644 = vmatpush2.bf16.msra.mxu0 0
      %645 = vmatprep.subr.bf16.mxu0 0
      %646 = vmatpush2.bf16.msra.mxu0 0
      %647 = vmatprep.subr.bf16.mxu0 0
      %648 = vmatpush2.bf16.msra.mxu0 0
      %649 = vmatprep.subr.bf16.mxu0 0
      %650 = vmatpush2.bf16.msra.mxu0 0
      %651 = vmatprep.subr.bf16.mxu0 0
      %652 = vmatpush2.bf16.msra.mxu0 0
      %653 = vmatprep.subr.bf16.mxu0 0
      %654 = vmatpush2.bf16.msra.mxu0 0
      %655 = vmatprep.subr.bf16.mxu0 0
      %656 = vmatpush2.bf16.msra.mxu0 0
      %657 = vmatprep.subr.bf16.mxu0 0
      %658 = vmatpush2.bf16.msra.mxu0 0
      %659 = vmatprep.mubr.bf16.mxu0 0
      %660 = vmatmul.mubr.bf16.gmra.mxu0 %v604
      %v661 = vpop.f32.mrf.mxu0
      %v662 = vadd.f32 %v535, %v661
      %v663 = vpop.f32.mrf.mxu0
      %v664 = vpop.f32.mrf.mxu0
      %v665 = vadd.f32 %v538, %v664
      %v666 = vpop.f32.mrf.mxu0
      %667 = vmatprep.mubr.bf16.mxu0 0
      %668 = vmatmul.mubr.bf16.gmra.mxu0 %v607
      %v669 = vpop.f32.mrf.mxu0
      %v670 = vadd.f32 %v543, %v669
      %v671 = vpop.f32.mrf.mxu0
      %v672 = vpop.f32.mrf.mxu0
      %v673 = vadd.f32 %v546, %v672
      %v674 = vpop.f32.mrf.mxu0
      %675 = vmatprep.mubr.bf16.mxu0 0
      %676 = vmatmul.mubr.bf16.gmra.mxu0 %v610
      %v677 = vpop.f32.mrf.mxu0
      %v678 = vadd.f32 %v551, %v677
      %v679 = vpop.f32.mrf.mxu0
      %v680 = vpop.f32.mrf.mxu0
      %v681 = vadd.f32 %v554, %v680
      %v682 = vpop.f32.mrf.mxu0
      %683 = vmatprep.mubr.bf16.mxu0 0
      %684 = vmatmul.mubr.bf16.gmra.mxu0 %v613
      %v685 = vpop.f32.mrf.mxu0
      %v686 = vadd.f32 %v559, %v685
      %v687 = vpop.f32.mrf.mxu0
      %v688 = vpop.f32.mrf.mxu0
      %v689 = vadd.f32 %v562, %v688
      %v690 = vpop.f32.mrf.mxu0
      %691 = vmatprep.mubr.bf16.mxu0 0
      %692 = vmatmul.mubr.bf16.gmra.mxu0 %v616
      %v693 = vpop.f32.mrf.mxu0
      %v694 = vadd.f32 %v567, %v693
      %v695 = vpop.f32.mrf.mxu0
      %v696 = vpop.f32.mrf.mxu0
      %v697 = vadd.f32 %v570, %v696
      %v698 = vpop.f32.mrf.mxu0
      %699 = vmatprep.mubr.bf16.mxu0 0
      %700 = vmatmul.mubr.bf16.gmra.mxu0 %v619
      %v701 = vpop.f32.mrf.mxu0
      %v702 = vadd.f32 %v575, %v701
      %v703 = vpop.f32.mrf.mxu0
      %v704 = vpop.f32.mrf.mxu0
      %v705 = vadd.f32 %v578, %v704
      %v706 = vpop.f32.mrf.mxu0
      %707 = vmatprep.mubr.bf16.mxu0 0
      %708 = vmatmul.mubr.bf16.gmra.mxu0 %v622
      %v709 = vpop.f32.mrf.mxu0
      %v710 = vadd.f32 %v583, %v709
      %v711 = vpop.f32.mrf.mxu0
      %v712 = vpop.f32.mrf.mxu0
      %v713 = vadd.f32 %v586, %v712
      %v714 = vpop.f32.mrf.mxu0
      %715 = vmatprep.mubr.bf16.mxu0 0
      %716 = vmatmul.mubr.bf16.gmra.mxu0 %v625
      %v717 = vpop.f32.mrf.mxu0
      %v718 = vadd.f32 %v591, %v717
      %v719 = vpop.f32.mrf.mxu0
      %v720 = vpop.f32.mrf.mxu0
      %v721 = vadd.f32 %v594, %v720
      %v722 = vpop.f32.mrf.mxu0
      %723 = vdwg.mxu0
      %v724 = vld [vmem:[%s6] sm:$0x1]
      %v726 = vlaneseq
      %v727 = vshrl.u32 %v726, 7
      %v728 = vsub.s32 0, %v727
      %v729 = vrot.slane %v724, %v728
      %v731 = vadd.f32 %v662, %v729
      %v732 = vadd.f32 %v665, %v729
      %v733 = vadd.f32 %v670, %v729
      %v734 = vadd.f32 %v673, %v729
      %v735 = vadd.f32 %v678, %v729
      %v736 = vadd.f32 %v681, %v729
      %v737 = vadd.f32 %v686, %v729
      %v738 = vadd.f32 %v689, %v729
      %v739 = vadd.f32 %v694, %v729
      %v740 = vadd.f32 %v697, %v729
      %v741 = vadd.f32 %v702, %v729
      %v742 = vadd.f32 %v705, %v729
      %v743 = vadd.f32 %v710, %v729
      %v744 = vadd.f32 %v713, %v729
      %v745 = vadd.f32 %v718, %v729
      %v746 = vadd.f32 %v721, %v729
      %v747 = vmax.f32 %v731, 0.0
      %v748 = vmax.f32 %v732, 0.0
      %v749 = vmax.f32 %v733, 0.0
      %v750 = vmax.f32 %v734, 0.0
      %v751 = vmax.f32 %v735, 0.0
      %v752 = vmax.f32 %v736, 0.0
      %v753 = vmax.f32 %v737, 0.0
      %v754 = vmax.f32 %v738, 0.0
      %v755 = vmax.f32 %v739, 0.0
      %v756 = vmax.f32 %v740, 0.0
      %v757 = vmax.f32 %v741, 0.0
      %v758 = vmax.f32 %v742, 0.0
      %v759 = vmax.f32 %v743, 0.0
      %v760 = vmax.f32 %v744, 0.0
      %v761 = vmax.f32 %v745, 0.0
      %v762 = vmax.f32 %v746, 0.0
      %v763 = vpack.c.bf16 %v748, %v747
      %v764 = vpack.c.bf16 %v750, %v749
      %v765 = vpack.c.bf16 %v752, %v751
      %v766 = vpack.c.bf16 %v754, %v753
      %v767 = vpack.c.bf16 %v756, %v755
      %v768 = vpack.c.bf16 %v758, %v757
      %v769 = vpack.c.bf16 %v760, %v759
      %v770 = vpack.c.bf16 %v762, %v761
      %v779 = vunpack.c.l.b16 %v763
      %v780 = vunpack.c.h.b16 %v763
      %v781 = vunpack.c.l.b16 %v764
      %v782 = vunpack.c.h.b16 %v764
      %v783 = vunpack.c.l.b16 %v765
      %v784 = vunpack.c.h.b16 %v765
      %v785 = vunpack.c.l.b16 %v766
      %v786 = vunpack.c.h.b16 %v766
      %v787 = vunpack.c.l.b16 %v767
      %v788 = vunpack.c.h.b16 %v767
      %v789 = vunpack.c.l.b16 %v768
      %v790 = vunpack.c.h.b16 %v768
      %v791 = vunpack.c.l.b16 %v769
      %v792 = vunpack.c.h.b16 %v769
      %v793 = vunpack.c.l.b16 %v770
      %v794 = vunpack.c.h.b16 %v770
      %v795 = vpack.c.b16 %v779, %v779
      %v796 = vpack.c.b16 %v780, %v780
      %v797 = vpack.c.b16 %v781, %v781
      %v798 = vpack.c.b16 %v782, %v782
      %v799 = vpack.c.b16 %v783, %v783
      %v800 = vpack.c.b16 %v784, %v784
      %v801 = vpack.c.b16 %v785, %v785
      %v802 = vpack.c.b16 %v786, %v786
      %v803 = vpack.c.b16 %v787, %v787
      %v804 = vpack.c.b16 %v788, %v788
      %v805 = vpack.c.b16 %v789, %v789
      %v806 = vpack.c.b16 %v790, %v790
      %v807 = vpack.c.b16 %v791, %v791
      %v808 = vpack.c.b16 %v792, %v792
      %v809 = vpack.c.b16 %v793, %v793
      %v810 = vpack.c.b16 %v794, %v794
      %827 = vst [vmem:[#allocation3] sm:$0xf] %v795
      %828 = vst [vmem:[#allocation3 + $0x4] sm:$0xf] %v796
      %829 = vst [vmem:[#allocation3 + $0x8] sm:$0xf] %v797
      %830 = vst [vmem:[#allocation3 + $0xc] sm:$0xf] %v798
      %831 = vst [vmem:[#allocation3 + $0x10] sm:$0xf] %v799
      %832 = vst [vmem:[#allocation3 + $0x14] sm:$0xf] %v800
      %833 = vst [vmem:[#allocation3 + $0x18] sm:$0xf] %v801
      %834 = vst [vmem:[#allocation3 + $0x1c] sm:$0xf] %v802
      %835 = vst [vmem:[#allocation3 + $0x20] sm:$0xf] %v803
      %836 = vst [vmem:[#allocation3 + $0x24] sm:$0xf] %v804
      %837 = vst [vmem:[#allocation3 + $0x28] sm:$0xf] %v805
      %838 = vst [vmem:[#allocation3 + $0x2c] sm:$0xf] %v806
      %839 = vst [vmem:[#allocation3 + $0x30] sm:$0xf] %v807
      %840 = vst [vmem:[#allocation3 + $0x34] sm:$0xf] %v808
      %841 = vst [vmem:[#allocation3 + $0x38] sm:$0xf] %v809
      %842 = vst [vmem:[#allocation3 + $0x3c] sm:$0xf] %v810
    $region37: #{tpu_custom_call.1} parent=1 // pred_fallthru
      _
    // Predicated region
    $region38: #{tpu_custom_call.1} parent=1 // pred_check
      _
    $region39: #{tpu_custom_call.1} parent=1 // pred_check_branch
      %844 = sbr.rel (0) target = $region41
    $region40: #{tpu_custom_call.1} parent=1 // pred_region
      %s846 = ssub.s32 1024, 1024
      %847 = vsyncadd [#allocation4], %s846
      %s848 = sshll.u32 [#allocation3], 4
      %s849 = int_to_ptr.vmem [resolvable:$true] %s848
      %854 = dma.vmem_to_hbm [thread:$0]  %s849, 1024, %s7, [#allocation4], 64, 64, 4
    $region41: #{tpu_custom_call.1} parent=1 // pred_fallthru
      _
    // Predicated region
    $region42: #{tpu_custom_call.1} parent=1 // pred_check
      _
    $region43: #{tpu_custom_call.1} parent=1 // pred_check_branch
      %856 = sbr.rel (0) target = $region45
    $region44: #{tpu_custom_call.1} parent=1 // pred_region
      %857 = dma.done [#allocation4], 1024
    $region45: #{tpu_custom_call.1} parent=1 // pred_fallthru
      _
    %858 = vsyncpa [#allocation4], 1

</llo_original>
